<compile_context>
chip_gen: v7x
topology: tpu7x:2x2x1
jax: 0.10.0
libtpu: 0.0.40
codegen_flags: <defaults>
</compile_context>

<pallas_src>
import functools

import jax
import jax.numpy as jnp
from jax.experimental import pallas as pl
from jax.experimental.pallas import tpu as pltpu


def _reverse_rows(x, axis):
    """Bit-exact reverse of `x` along `axis` using only broadcast/iota/select
    (avoids lax.rev, which Mosaic may not lower, and avoids MXU rounding)."""
    g = x.shape[axis]
    if g == 1:
        return x
    row = jax.lax.broadcasted_iota(jnp.int32, x.shape, axis)

    def row_k(k):
        idx = tuple(slice(k, k + 1) if d == axis else slice(None)
                    for d in range(x.ndim))
        return jnp.broadcast_to(x[idx], x.shape)

    out = row_k(g - 1)                      # source row g-1 -> output row 0
    for k in range(g - 2, -1, -1):          # source row k   -> output row g-1-k
        out = jnp.where(row == (g - 1 - k), row_k(k), out)
    return out


def _vflip_kernel(x_ref, o_ref):
    # x_ref / o_ref: (TB, 1, G, W).  The input index_map already delivered the
    # mirrored G-row group; reverse the G rows inside it.
    G = x_ref.shape[2]
    if G % 8 == 0:
        # Aligned 8-row sub-groups: constant per-element VALU cost regardless
        # of G; loads/stores are full (8,128)-aligned tiles (no masking).
        ns = G // 8
        for sg in range(ns):
            blk = x_ref[:, :, sg * 8:(sg + 1) * 8, :]
            dst = ns - 1 - sg
            o_ref[:, :, dst * 8:(dst + 1) * 8, :] = _reverse_rows(blk, axis=2)
    else:
        # Rare fallback (H has no multiple-of-8 divisor); G is kept <= 8 by
        # the blocking picker so the select chain stays cheap.
        o_ref[...] = _reverse_rows(x_ref[...], axis=2)


def _pick_blocking(P, H, W, itemsize, target_bytes=1 << 20, max_g=64):
    """Choose (G rows per group, TB planes per block) with G | H and TB | P.

    Prefers G that is a multiple of 8 (cheap aligned sub-group reversal in the
    kernel), as large as fits ~target_bytes; otherwise falls back to the
    largest divisor of H that is <= 8 so the in-kernel select chain stays
    short.  TB then fills the block up to ~target_bytes."""
    def divisors(n):
        return [d for d in range(1, n + 1) if n % d == 0]

    row_cost = W * itemsize
    g_mult8 = [g for g in divisors(H) if g % 8 == 0 and g <= max_g]
    if g_mult8:
        fitting = [g for g in g_mult8 if g * row_cost <= target_bytes]
        G = max(fitting) if fitting else min(g_mult8)
    else:
        G = max(g for g in divisors(H) if g <= 8)

    group_bytes = G * row_cost
    tb_cap = max(1, target_bytes // group_bytes)
    TB = max(d for d in divisors(P) if d <= tb_cap)
    return G, TB


def _vflip_pallas(x):
    """Unconditional vertical flip (reverse H) of an NCHW tensor via Pallas."""
    N, C, H, W = x.shape
    P = N * C
    itemsize = jnp.dtype(x.dtype).itemsize
    G, TB = _pick_blocking(P, H, W, itemsize)
    nG = H // G

    # Free reshape: (G, W) are exactly the minor dims and always span the full
    # extent of their (reshaped) axes, so the (8, 128) tiling rule is
    # satisfied for any G / W.
    xr = x.reshape(P, nG, G, W)

    out = pl.pallas_call(
        _vflip_kernel,
        out_shape=jax.ShapeDtypeStruct((P, nG, G, W), x.dtype),
        grid=(P // TB, nG),
        in_specs=[pl.BlockSpec((TB, 1, G, W),
                               lambda pi, gi: (pi, nG - 1 - gi, 0, 0))],
        out_specs=pl.BlockSpec((TB, 1, G, W),
                               lambda pi, gi: (pi, gi, 0, 0)),
        compiler_params=pltpu.CompilerParams(
            dimension_semantics=("parallel", "parallel"),
            vmem_limit_bytes=32 * 1024 * 1024),
    )(xr)
    # TODO(synk): for tiny W (<128) a wrapper-side repack to a lane-dense last
    # dim would avoid masked stores; real image widths (>=128) are already
    # lane-dense, so the free NCHW reshape is kept.
    return out.reshape(N, C, H, W)


def d_vertical_flip(img, mask, key, p=0.5):
    """JAX/Pallas equivalent of dVerticalFlip.forward(img, mask)."""
    u = jax.random.uniform(key, (), dtype=jnp.float32)   # torch.rand(1) < p
    do_flip = u < jnp.float32(p)

    def maybe_flip(x):
        if x is None:
            return None
        # lax.cond: the no-flip branch is a free identity (no HBM traffic).
        return jax.lax.cond(do_flip, _vflip_pallas, lambda t: t, x)

    return maybe_flip(img), maybe_flip(mask)


if __name__ == "__main__":
    key = jax.random.PRNGKey(0)
    k_img, k_mask, k_flip = jax.random.split(key, 3)

    # NCHW inputs consistent with the module (image + single-channel mask).
    img = jax.random.normal(k_img, (2, 4, 16, 16), dtype=jnp.float32)
    mask = (jax.random.uniform(k_mask, (2, 1, 16, 16)) > 0.5).astype(jnp.float32)

    fwd = jax.jit(functools.partial(d_vertical_flip, p=0.5))
    img_out, mask_out = fwd(img, mask, k_flip)
    jax.block_until_ready(img_out)
    jax.block_until_ready(mask_out)

    # Reference: same draw as inside d_vertical_flip.
    u = jax.random.uniform(k_flip, (), dtype=jnp.float32)
    do_flip = bool(u < 0.5)
    ref_img = jnp.flip(img, axis=2) if do_flip else img
    ref_mask = jnp.flip(mask, axis=2) if do_flip else mask
    assert jnp.array_equal(img_out, ref_img), "img mismatch"
    assert jnp.array_equal(mask_out, ref_mask), "mask mismatch"

    # Exercise the flip kernel itself (bit-exact) on several shapes:
    #  * the module shapes (sub-group path, single group),
    #  * H not a multiple of 8 / W not a multiple of 128 (fallback chain),
    #  * H large enough that the mirrored index_map path (nG > 1) and the
    #    multi-sub-group kernel are both active.
    assert jnp.array_equal(_vflip_pallas(img), jnp.flip(img, axis=2)), "flip img"
    assert jnp.array_equal(_vflip_pallas(mask), jnp.flip(mask, axis=2)), "flip mask"
    x_odd = jax.random.normal(key, (1, 3, 12, 20), dtype=jnp.float32)
    assert jnp.array_equal(_vflip_pallas(x_odd), jnp.flip(x_odd, axis=2)), "flip odd"
    x_big = jax.random.normal(key, (1, 1, 128, 128), dtype=jnp.float32)
    assert jnp.array_equal(_vflip_pallas(x_big), jnp.flip(x_big, axis=2)), "flip big"

    print("KERNEL_OK")
</pallas_src>

<mosaic_0001>
module attributes {stable_mosaic.version = 11 : i64} {
  func.func @_vflip_kernel(%arg0: i32, %arg1: i32, %arg2: memref<8x1x16x16xf32, #tpu.memory_space<vmem>>, %arg3: memref<8x1x16x16xf32, #tpu.memory_space<vmem>>) attributes {dimension_semantics = [#tpu.dimension_semantics<parallel>, #tpu.dimension_semantics<parallel>], iteration_bounds = array<i64: 1, 1>, scalar_prefetch = 0 : i64, scratch_operands = 0 : i64, tpu.core_type = #tpu.core_type<tc>, window_params = [{transform_indices = @transform_0, window_bounds = array<i64: 8, 1, 16, 16>}, {transform_indices = @transform_1, window_bounds = array<i64: 8, 1, 16, 16>}]} {
    %c0 = arith.constant 0 : index
    %c0_0 = arith.constant 0 : index
    %c0_1 = arith.constant 0 : index
    %c0_2 = arith.constant 0 : index
    %0 = vector.load %arg2[%c0, %c0_0, %c0_1, %c0_2] : memref<8x1x16x16xf32, #tpu.memory_space<vmem>>, vector<8x1x8x16xf32>
    %1 = tpu.iota {dimensions = array<i32: 2>} : vector<8x1x8x16xi32>
    %2 = vector.extract_strided_slice %0 {offsets = [0, 0, 7, 0], sizes = [8, 1, 1, 16], strides = [1, 1, 1, 1]} : vector<8x1x8x16xf32> to vector<8x1x1x16xf32>
    %3 = vector.shape_cast %2 : vector<8x1x1x16xf32> to vector<8x1x1x16xf32>
    %4 = vector.broadcast %3 : vector<8x1x1x16xf32> to vector<8x1x8x16xf32>
    %c1_i32 = arith.constant 1 : i32
    %5 = vector.broadcast %c1_i32 : i32 to vector<8x1x8x16xi32>
    %6 = arith.cmpi eq, %1, %5 : vector<8x1x8x16xi32>
    %7 = vector.extract_strided_slice %0 {offsets = [0, 0, 6, 0], sizes = [8, 1, 1, 16], strides = [1, 1, 1, 1]} : vector<8x1x8x16xf32> to vector<8x1x1x16xf32>
    %8 = vector.shape_cast %7 : vector<8x1x1x16xf32> to vector<8x1x1x16xf32>
    %9 = vector.broadcast %8 : vector<8x1x1x16xf32> to vector<8x1x8x16xf32>
    %10 = arith.select %6, %9, %4 : vector<8x1x8x16xi1>, vector<8x1x8x16xf32>
    %c2_i32 = arith.constant 2 : i32
    %11 = vector.broadcast %c2_i32 : i32 to vector<8x1x8x16xi32>
    %12 = arith.cmpi eq, %1, %11 : vector<8x1x8x16xi32>
    %13 = vector.extract_strided_slice %0 {offsets = [0, 0, 5, 0], sizes = [8, 1, 1, 16], strides = [1, 1, 1, 1]} : vector<8x1x8x16xf32> to vector<8x1x1x16xf32>
    %14 = vector.shape_cast %13 : vector<8x1x1x16xf32> to vector<8x1x1x16xf32>
    %15 = vector.broadcast %14 : vector<8x1x1x16xf32> to vector<8x1x8x16xf32>
    %16 = arith.select %12, %15, %10 : vector<8x1x8x16xi1>, vector<8x1x8x16xf32>
    %c3_i32 = arith.constant 3 : i32
    %17 = vector.broadcast %c3_i32 : i32 to vector<8x1x8x16xi32>
    %18 = arith.cmpi eq, %1, %17 : vector<8x1x8x16xi32>
    %19 = vector.extract_strided_slice %0 {offsets = [0, 0, 4, 0], sizes = [8, 1, 1, 16], strides = [1, 1, 1, 1]} : vector<8x1x8x16xf32> to vector<8x1x1x16xf32>
    %20 = vector.shape_cast %19 : vector<8x1x1x16xf32> to vector<8x1x1x16xf32>
    %21 = vector.broadcast %20 : vector<8x1x1x16xf32> to vector<8x1x8x16xf32>
    %22 = arith.select %18, %21, %16 : vector<8x1x8x16xi1>, vector<8x1x8x16xf32>
    %c4_i32 = arith.constant 4 : i32
    %23 = vector.broadcast %c4_i32 : i32 to vector<8x1x8x16xi32>
    %24 = arith.cmpi eq, %1, %23 : vector<8x1x8x16xi32>
    %25 = vector.extract_strided_slice %0 {offsets = [0, 0, 3, 0], sizes = [8, 1, 1, 16], strides = [1, 1, 1, 1]} : vector<8x1x8x16xf32> to vector<8x1x1x16xf32>
    %26 = vector.shape_cast %25 : vector<8x1x1x16xf32> to vector<8x1x1x16xf32>
    %27 = vector.broadcast %26 : vector<8x1x1x16xf32> to vector<8x1x8x16xf32>
    %28 = arith.select %24, %27, %22 : vector<8x1x8x16xi1>, vector<8x1x8x16xf32>
    %c5_i32 = arith.constant 5 : i32
    %29 = vector.broadcast %c5_i32 : i32 to vector<8x1x8x16xi32>
    %30 = arith.cmpi eq, %1, %29 : vector<8x1x8x16xi32>
    %31 = vector.extract_strided_slice %0 {offsets = [0, 0, 2, 0], sizes = [8, 1, 1, 16], strides = [1, 1, 1, 1]} : vector<8x1x8x16xf32> to vector<8x1x1x16xf32>
    %32 = vector.shape_cast %31 : vector<8x1x1x16xf32> to vector<8x1x1x16xf32>
    %33 = vector.broadcast %32 : vector<8x1x1x16xf32> to vector<8x1x8x16xf32>
    %34 = arith.select %30, %33, %28 : vector<8x1x8x16xi1>, vector<8x1x8x16xf32>
    %c6_i32 = arith.constant 6 : i32
    %35 = vector.broadcast %c6_i32 : i32 to vector<8x1x8x16xi32>
    %36 = arith.cmpi eq, %1, %35 : vector<8x1x8x16xi32>
    %37 = vector.extract_strided_slice %0 {offsets = [0, 0, 1, 0], sizes = [8, 1, 1, 16], strides = [1, 1, 1, 1]} : vector<8x1x8x16xf32> to vector<8x1x1x16xf32>
    %38 = vector.shape_cast %37 : vector<8x1x1x16xf32> to vector<8x1x1x16xf32>
    %39 = vector.broadcast %38 : vector<8x1x1x16xf32> to vector<8x1x8x16xf32>
    %40 = arith.select %36, %39, %34 : vector<8x1x8x16xi1>, vector<8x1x8x16xf32>
    %c7_i32 = arith.constant 7 : i32
    %41 = vector.broadcast %c7_i32 : i32 to vector<8x1x8x16xi32>
    %42 = arith.cmpi eq, %1, %41 : vector<8x1x8x16xi32>
    %43 = vector.extract_strided_slice %0 {offsets = [0, 0, 0, 0], sizes = [8, 1, 1, 16], strides = [1, 1, 1, 1]} : vector<8x1x8x16xf32> to vector<8x1x1x16xf32>
    %44 = vector.shape_cast %43 : vector<8x1x1x16xf32> to vector<8x1x1x16xf32>
    %45 = vector.broadcast %44 : vector<8x1x1x16xf32> to vector<8x1x8x16xf32>
    %46 = arith.select %42, %45, %40 : vector<8x1x8x16xi1>, vector<8x1x8x16xf32>
    %c0_3 = arith.constant 0 : index
    %c0_4 = arith.constant 0 : index
    %c8 = arith.constant 8 : index
    %c0_5 = arith.constant 0 : index
    %47 = vector.load %arg3[%c0_3, %c0_4, %c8, %c0_5] : memref<8x1x16x16xf32, #tpu.memory_space<vmem>>, vector<8x1x8x16xf32>
    tpu.vector_store %arg3[%c0_3, %c0_4, %c8, %c0_5], %46 {strides = array<i32>} : memref<8x1x16x16xf32, #tpu.memory_space<vmem>>, vector<8x1x8x16xf32>,
    %c0_6 = arith.constant 0 : index
    %c0_7 = arith.constant 0 : index
    %c8_8 = arith.constant 8 : index
    %c0_9 = arith.constant 0 : index
    %48 = vector.load %arg2[%c0_6, %c0_7, %c8_8, %c0_9] : memref<8x1x16x16xf32, #tpu.memory_space<vmem>>, vector<8x1x8x16xf32>
    %49 = tpu.iota {dimensions = array<i32: 2>} : vector<8x1x8x16xi32>
    %50 = vector.extract_strided_slice %48 {offsets = [0, 0, 7, 0], sizes = [8, 1, 1, 16], strides = [1, 1, 1, 1]} : vector<8x1x8x16xf32> to vector<8x1x1x16xf32>
    %51 = vector.shape_cast %50 : vector<8x1x1x16xf32> to vector<8x1x1x16xf32>
    %52 = vector.broadcast %51 : vector<8x1x1x16xf32> to vector<8x1x8x16xf32>
    %c1_i32_10 = arith.constant 1 : i32
    %53 = vector.broadcast %c1_i32_10 : i32 to vector<8x1x8x16xi32>
    %54 = arith.cmpi eq, %49, %53 : vector<8x1x8x16xi32>
    %55 = vector.extract_strided_slice %48 {offsets = [0, 0, 6, 0], sizes = [8, 1, 1, 16], strides = [1, 1, 1, 1]} : vector<8x1x8x16xf32> to vector<8x1x1x16xf32>
    %56 = vector.shape_cast %55 : vector<8x1x1x16xf32> to vector<8x1x1x16xf32>
    %57 = vector.broadcast %56 : vector<8x1x1x16xf32> to vector<8x1x8x16xf32>
    %58 = arith.select %54, %57, %52 : vector<8x1x8x16xi1>, vector<8x1x8x16xf32>
    %c2_i32_11 = arith.constant 2 : i32
    %59 = vector.broadcast %c2_i32_11 : i32 to vector<8x1x8x16xi32>
    %60 = arith.cmpi eq, %49, %59 : vector<8x1x8x16xi32>
    %61 = vector.extract_strided_slice %48 {offsets = [0, 0, 5, 0], sizes = [8, 1, 1, 16], strides = [1, 1, 1, 1]} : vector<8x1x8x16xf32> to vector<8x1x1x16xf32>
    %62 = vector.shape_cast %61 : vector<8x1x1x16xf32> to vector<8x1x1x16xf32>
    %63 = vector.broadcast %62 : vector<8x1x1x16xf32> to vector<8x1x8x16xf32>
    %64 = arith.select %60, %63, %58 : vector<8x1x8x16xi1>, vector<8x1x8x16xf32>
    %c3_i32_12 = arith.constant 3 : i32
    %65 = vector.broadcast %c3_i32_12 : i32 to vector<8x1x8x16xi32>
    %66 = arith.cmpi eq, %49, %65 : vector<8x1x8x16xi32>
    %67 = vector.extract_strided_slice %48 {offsets = [0, 0, 4, 0], sizes = [8, 1, 1, 16], strides = [1, 1, 1, 1]} : vector<8x1x8x16xf32> to vector<8x1x1x16xf32>
    %68 = vector.shape_cast %67 : vector<8x1x1x16xf32> to vector<8x1x1x16xf32>
    %69 = vector.broadcast %68 : vector<8x1x1x16xf32> to vector<8x1x8x16xf32>
    %70 = arith.select %66, %69, %64 : vector<8x1x8x16xi1>, vector<8x1x8x16xf32>
    %c4_i32_13 = arith.constant 4 : i32
    %71 = vector.broadcast %c4_i32_13 : i32 to vector<8x1x8x16xi32>
    %72 = arith.cmpi eq, %49, %71 : vector<8x1x8x16xi32>
    %73 = vector.extract_strided_slice %48 {offsets = [0, 0, 3, 0], sizes = [8, 1, 1, 16], strides = [1, 1, 1, 1]} : vector<8x1x8x16xf32> to vector<8x1x1x16xf32>
    %74 = vector.shape_cast %73 : vector<8x1x1x16xf32> to vector<8x1x1x16xf32>
    %75 = vector.broadcast %74 : vector<8x1x1x16xf32> to vector<8x1x8x16xf32>
    %76 = arith.select %72, %75, %70 : vector<8x1x8x16xi1>, vector<8x1x8x16xf32>
    %c5_i32_14 = arith.constant 5 : i32
    %77 = vector.broadcast %c5_i32_14 : i32 to vector<8x1x8x16xi32>
    %78 = arith.cmpi eq, %49, %77 : vector<8x1x8x16xi32>
    %79 = vector.extract_strided_slice %48 {offsets = [0, 0, 2, 0], sizes = [8, 1, 1, 16], strides = [1, 1, 1, 1]} : vector<8x1x8x16xf32> to vector<8x1x1x16xf32>
    %80 = vector.shape_cast %79 : vector<8x1x1x16xf32> to vector<8x1x1x16xf32>
    %81 = vector.broadcast %80 : vector<8x1x1x16xf32> to vector<8x1x8x16xf32>
    %82 = arith.select %78, %81, %76 : vector<8x1x8x16xi1>, vector<8x1x8x16xf32>
    %c6_i32_15 = arith.constant 6 : i32
    %83 = vector.broadcast %c6_i32_15 : i32 to vector<8x1x8x16xi32>
    %84 = arith.cmpi eq, %49, %83 : vector<8x1x8x16xi32>
    %85 = vector.extract_strided_slice %48 {offsets = [0, 0, 1, 0], sizes = [8, 1, 1, 16], strides = [1, 1, 1, 1]} : vector<8x1x8x16xf32> to vector<8x1x1x16xf32>
    %86 = vector.shape_cast %85 : vector<8x1x1x16xf32> to vector<8x1x1x16xf32>
    %87 = vector.broadcast %86 : vector<8x1x1x16xf32> to vector<8x1x8x16xf32>
    %88 = arith.select %84, %87, %82 : vector<8x1x8x16xi1>, vector<8x1x8x16xf32>
    %c7_i32_16 = arith.constant 7 : i32
    %89 = vector.broadcast %c7_i32_16 : i32 to vector<8x1x8x16xi32>
    %90 = arith.cmpi eq, %49, %89 : vector<8x1x8x16xi32>
    %91 = vector.extract_strided_slice %48 {offsets = [0, 0, 0, 0], sizes = [8, 1, 1, 16], strides = [1, 1, 1, 1]} : vector<8x1x8x16xf32> to vector<8x1x1x16xf32>
    %92 = vector.shape_cast %91 : vector<8x1x1x16xf32> to vector<8x1x1x16xf32>
    %93 = vector.broadcast %92 : vector<8x1x1x16xf32> to vector<8x1x8x16xf32>
    %94 = arith.select %90, %93, %88 : vector<8x1x8x16xi1>, vector<8x1x8x16xf32>
    %c0_17 = arith.constant 0 : index
    %c0_18 = arith.constant 0 : index
    %c0_19 = arith.constant 0 : index
    %c0_20 = arith.constant 0 : index
    %95 = vector.load %arg3[%c0_17, %c0_18, %c0_19, %c0_20] : memref<8x1x16x16xf32, #tpu.memory_space<vmem>>, vector<8x1x8x16xf32>
    tpu.vector_store %arg3[%c0_17, %c0_18, %c0_19, %c0_20], %94 {strides = array<i32>} : memref<8x1x16x16xf32, #tpu.memory_space<vmem>>, vector<8x1x8x16xf32>,
    return
  }
  func.func @transform_0(%arg0: i32, %arg1: i32) -> (i32, i32, i32, i32) {
    %c0_i32 = arith.constant 0 : i32
    %0 = arith.subi %c0_i32, %arg1 : i32
    %c0_i32_0 = arith.constant 0 : i32
    %c0_i32_1 = arith.constant 0 : i32
    %c0_i32_2 = arith.constant 0 : i32
    return %arg0, %0, %c0_i32_0, %c0_i32_1 : i32, i32, i32, i32
  }
  func.func @transform_1(%arg0: i32, %arg1: i32) -> (i32, i32, i32, i32) {
    %c0_i32 = arith.constant 0 : i32
    %c0_i32_0 = arith.constant 0 : i32
    %c0_i32_1 = arith.constant 0 : i32
    return %arg0, %arg1, %c0_i32, %c0_i32_0 : i32, i32, i32, i32
  }
}

module attributes {stable_mosaic.version = 11 : i64} {
  func.func @_vflip_kernel(%arg0: i32, %arg1: i32, %arg2: memref<2x1x16x16xf32, #tpu.memory_space<vmem>>, %arg3: memref<2x1x16x16xf32, #tpu.memory_space<vmem>>) attributes {dimension_semantics = [#tpu.dimension_semantics<parallel>, #tpu.dimension_semantics<parallel>], iteration_bounds = array<i64: 1, 1>, scalar_prefetch = 0 : i64, scratch_operands = 0 : i64, tpu.core_type = #tpu.core_type<tc>, window_params = [{transform_indices = @transform_0, window_bounds = array<i64: 2, 1, 16, 16>}, {transform_indices = @transform_1, window_bounds = array<i64: 2, 1, 16, 16>}]} {
    %c0 = arith.constant 0 : index
    %c0_0 = arith.constant 0 : index
    %c0_1 = arith.constant 0 : index
    %c0_2 = arith.constant 0 : index
    %0 = vector.load %arg2[%c0, %c0_0, %c0_1, %c0_2] : memref<2x1x16x16xf32, #tpu.memory_space<vmem>>, vector<2x1x8x16xf32>
    %1 = tpu.iota {dimensions = array<i32: 2>} : vector<2x1x8x16xi32>
    %2 = vector.extract_strided_slice %0 {offsets = [0, 0, 7, 0], sizes = [2, 1, 1, 16], strides = [1, 1, 1, 1]} : vector<2x1x8x16xf32> to vector<2x1x1x16xf32>
    %3 = vector.shape_cast %2 : vector<2x1x1x16xf32> to vector<2x1x1x16xf32>
    %4 = vector.broadcast %3 : vector<2x1x1x16xf32> to vector<2x1x8x16xf32>
    %c1_i32 = arith.constant 1 : i32
    %5 = vector.broadcast %c1_i32 : i32 to vector<2x1x8x16xi32>
    %6 = arith.cmpi eq, %1, %5 : vector<2x1x8x16xi32>
    %7 = vector.extract_strided_slice %0 {offsets = [0, 0, 6, 0], sizes = [2, 1, 1, 16], strides = [1, 1, 1, 1]} : vector<2x1x8x16xf32> to vector<2x1x1x16xf32>
    %8 = vector.shape_cast %7 : vector<2x1x1x16xf32> to vector<2x1x1x16xf32>
    %9 = vector.broadcast %8 : vector<2x1x1x16xf32> to vector<2x1x8x16xf32>
    %10 = arith.select %6, %9, %4 : vector<2x1x8x16xi1>, vector<2x1x8x16xf32>
    %c2_i32 = arith.constant 2 : i32
    %11 = vector.broadcast %c2_i32 : i32 to vector<2x1x8x16xi32>
    %12 = arith.cmpi eq, %1, %11 : vector<2x1x8x16xi32>
    %13 = vector.extract_strided_slice %0 {offsets = [0, 0, 5, 0], sizes = [2, 1, 1, 16], strides = [1, 1, 1, 1]} : vector<2x1x8x16xf32> to vector<2x1x1x16xf32>
    %14 = vector.shape_cast %13 : vector<2x1x1x16xf32> to vector<2x1x1x16xf32>
    %15 = vector.broadcast %14 : vector<2x1x1x16xf32> to vector<2x1x8x16xf32>
    %16 = arith.select %12, %15, %10 : vector<2x1x8x16xi1>, vector<2x1x8x16xf32>
    %c3_i32 = arith.constant 3 : i32
    %17 = vector.broadcast %c3_i32 : i32 to vector<2x1x8x16xi32>
    %18 = arith.cmpi eq, %1, %17 : vector<2x1x8x16xi32>
    %19 = vector.extract_strided_slice %0 {offsets = [0, 0, 4, 0], sizes = [2, 1, 1, 16], strides = [1, 1, 1, 1]} : vector<2x1x8x16xf32> to vector<2x1x1x16xf32>
    %20 = vector.shape_cast %19 : vector<2x1x1x16xf32> to vector<2x1x1x16xf32>
    %21 = vector.broadcast %20 : vector<2x1x1x16xf32> to vector<2x1x8x16xf32>
    %22 = arith.select %18, %21, %16 : vector<2x1x8x16xi1>, vector<2x1x8x16xf32>
    %c4_i32 = arith.constant 4 : i32
    %23 = vector.broadcast %c4_i32 : i32 to vector<2x1x8x16xi32>
    %24 = arith.cmpi eq, %1, %23 : vector<2x1x8x16xi32>
    %25 = vector.extract_strided_slice %0 {offsets = [0, 0, 3, 0], sizes = [2, 1, 1, 16], strides = [1, 1, 1, 1]} : vector<2x1x8x16xf32> to vector<2x1x1x16xf32>
    %26 = vector.shape_cast %25 : vector<2x1x1x16xf32> to vector<2x1x1x16xf32>
    %27 = vector.broadcast %26 : vector<2x1x1x16xf32> to vector<2x1x8x16xf32>
    %28 = arith.select %24, %27, %22 : vector<2x1x8x16xi1>, vector<2x1x8x16xf32>
    %c5_i32 = arith.constant 5 : i32
    %29 = vector.broadcast %c5_i32 : i32 to vector<2x1x8x16xi32>
    %30 = arith.cmpi eq, %1, %29 : vector<2x1x8x16xi32>
    %31 = vector.extract_strided_slice %0 {offsets = [0, 0, 2, 0], sizes = [2, 1, 1, 16], strides = [1, 1, 1, 1]} : vector<2x1x8x16xf32> to vector<2x1x1x16xf32>
    %32 = vector.shape_cast %31 : vector<2x1x1x16xf32> to vector<2x1x1x16xf32>
    %33 = vector.broadcast %32 : vector<2x1x1x16xf32> to vector<2x1x8x16xf32>
    %34 = arith.select %30, %33, %28 : vector<2x1x8x16xi1>, vector<2x1x8x16xf32>
    %c6_i32 = arith.constant 6 : i32
    %35 = vector.broadcast %c6_i32 : i32 to vector<2x1x8x16xi32>
    %36 = arith.cmpi eq, %1, %35 : vector<2x1x8x16xi32>
    %37 = vector.extract_strided_slice %0 {offsets = [0, 0, 1, 0], sizes = [2, 1, 1, 16], strides = [1, 1, 1, 1]} : vector<2x1x8x16xf32> to vector<2x1x1x16xf32>
    %38 = vector.shape_cast %37 : vector<2x1x1x16xf32> to vector<2x1x1x16xf32>
    %39 = vector.broadcast %38 : vector<2x1x1x16xf32> to vector<2x1x8x16xf32>
    %40 = arith.select %36, %39, %34 : vector<2x1x8x16xi1>, vector<2x1x8x16xf32>
    %c7_i32 = arith.constant 7 : i32
    %41 = vector.broadcast %c7_i32 : i32 to vector<2x1x8x16xi32>
    %42 = arith.cmpi eq, %1, %41 : vector<2x1x8x16xi32>
    %43 = vector.extract_strided_slice %0 {offsets = [0, 0, 0, 0], sizes = [2, 1, 1, 16], strides = [1, 1, 1, 1]} : vector<2x1x8x16xf32> to vector<2x1x1x16xf32>
    %44 = vector.shape_cast %43 : vector<2x1x1x16xf32> to vector<2x1x1x16xf32>
    %45 = vector.broadcast %44 : vector<2x1x1x16xf32> to vector<2x1x8x16xf32>
    %46 = arith.select %42, %45, %40 : vector<2x1x8x16xi1>, vector<2x1x8x16xf32>
    %c0_3 = arith.constant 0 : index
    %c0_4 = arith.constant 0 : index
    %c8 = arith.constant 8 : index
    %c0_5 = arith.constant 0 : index
    %47 = vector.load %arg3[%c0_3, %c0_4, %c8, %c0_5] : memref<2x1x16x16xf32, #tpu.memory_space<vmem>>, vector<2x1x8x16xf32>
    tpu.vector_store %arg3[%c0_3, %c0_4, %c8, %c0_5], %46 {strides = array<i32>} : memref<2x1x16x16xf32, #tpu.memory_space<vmem>>, vector<2x1x8x16xf32>,
    %c0_6 = arith.constant 0 : index
    %c0_7 = arith.constant 0 : index
    %c8_8 = arith.constant 8 : index
    %c0_9 = arith.constant 0 : index
    %48 = vector.load %arg2[%c0_6, %c0_7, %c8_8, %c0_9] : memref<2x1x16x16xf32, #tpu.memory_space<vmem>>, vector<2x1x8x16xf32>
    %49 = tpu.iota {dimensions = array<i32: 2>} : vector<2x1x8x16xi32>
    %50 = vector.extract_strided_slice %48 {offsets = [0, 0, 7, 0], sizes = [2, 1, 1, 16], strides = [1, 1, 1, 1]} : vector<2x1x8x16xf32> to vector<2x1x1x16xf32>
    %51 = vector.shape_cast %50 : vector<2x1x1x16xf32> to vector<2x1x1x16xf32>
    %52 = vector.broadcast %51 : vector<2x1x1x16xf32> to vector<2x1x8x16xf32>
    %c1_i32_10 = arith.constant 1 : i32
    %53 = vector.broadcast %c1_i32_10 : i32 to vector<2x1x8x16xi32>
    %54 = arith.cmpi eq, %49, %53 : vector<2x1x8x16xi32>
    %55 = vector.extract_strided_slice %48 {offsets = [0, 0, 6, 0], sizes = [2, 1, 1, 16], strides = [1, 1, 1, 1]} : vector<2x1x8x16xf32> to vector<2x1x1x16xf32>
    %56 = vector.shape_cast %55 : vector<2x1x1x16xf32> to vector<2x1x1x16xf32>
    %57 = vector.broadcast %56 : vector<2x1x1x16xf32> to vector<2x1x8x16xf32>
    %58 = arith.select %54, %57, %52 : vector<2x1x8x16xi1>, vector<2x1x8x16xf32>
    %c2_i32_11 = arith.constant 2 : i32
    %59 = vector.broadcast %c2_i32_11 : i32 to vector<2x1x8x16xi32>
    %60 = arith.cmpi eq, %49, %59 : vector<2x1x8x16xi32>
    %61 = vector.extract_strided_slice %48 {offsets = [0, 0, 5, 0], sizes = [2, 1, 1, 16], strides = [1, 1, 1, 1]} : vector<2x1x8x16xf32> to vector<2x1x1x16xf32>
    %62 = vector.shape_cast %61 : vector<2x1x1x16xf32> to vector<2x1x1x16xf32>
    %63 = vector.broadcast %62 : vector<2x1x1x16xf32> to vector<2x1x8x16xf32>
    %64 = arith.select %60, %63, %58 : vector<2x1x8x16xi1>, vector<2x1x8x16xf32>
    %c3_i32_12 = arith.constant 3 : i32
    %65 = vector.broadcast %c3_i32_12 : i32 to vector<2x1x8x16xi32>
    %66 = arith.cmpi eq, %49, %65 : vector<2x1x8x16xi32>
    %67 = vector.extract_strided_slice %48 {offsets = [0, 0, 4, 0], sizes = [2, 1, 1, 16], strides = [1, 1, 1, 1]} : vector<2x1x8x16xf32> to vector<2x1x1x16xf32>
    %68 = vector.shape_cast %67 : vector<2x1x1x16xf32> to vector<2x1x1x16xf32>
    %69 = vector.broadcast %68 : vector<2x1x1x16xf32> to vector<2x1x8x16xf32>
    %70 = arith.select %66, %69, %64 : vector<2x1x8x16xi1>, vector<2x1x8x16xf32>
    %c4_i32_13 = arith.constant 4 : i32
    %71 = vector.broadcast %c4_i32_13 : i32 to vector<2x1x8x16xi32>
    %72 = arith.cmpi eq, %49, %71 : vector<2x1x8x16xi32>
    %73 = vector.extract_strided_slice %48 {offsets = [0, 0, 3, 0], sizes = [2, 1, 1, 16], strides = [1, 1, 1, 1]} : vector<2x1x8x16xf32> to vector<2x1x1x16xf32>
    %74 = vector.shape_cast %73 : vector<2x1x1x16xf32> to vector<2x1x1x16xf32>
    %75 = vector.broadcast %74 : vector<2x1x1x16xf32> to vector<2x1x8x16xf32>
    %76 = arith.select %72, %75, %70 : vector<2x1x8x16xi1>, vector<2x1x8x16xf32>
    %c5_i32_14 = arith.constant 5 : i32
    %77 = vector.broadcast %c5_i32_14 : i32 to vector<2x1x8x16xi32>
    %78 = arith.cmpi eq, %49, %77 : vector<2x1x8x16xi32>
    %79 = vector.extract_strided_slice %48 {offsets = [0, 0, 2, 0], sizes = [2, 1, 1, 16], strides = [1, 1, 1, 1]} : vector<2x1x8x16xf32> to vector<2x1x1x16xf32>
    %80 = vector.shape_cast %79 : vector<2x1x1x16xf32> to vector<2x1x1x16xf32>
    %81 = vector.broadcast %80 : vector<2x1x1x16xf32> to vector<2x1x8x16xf32>
    %82 = arith.select %78, %81, %76 : vector<2x1x8x16xi1>, vector<2x1x8x16xf32>
    %c6_i32_15 = arith.constant 6 : i32
    %83 = vector.broadcast %c6_i32_15 : i32 to vector<2x1x8x16xi32>
    %84 = arith.cmpi eq, %49, %83 : vector<2x1x8x16xi32>
    %85 = vector.extract_strided_slice %48 {offsets = [0, 0, 1, 0], sizes = [2, 1, 1, 16], strides = [1, 1, 1, 1]} : vector<2x1x8x16xf32> to vector<2x1x1x16xf32>
    %86 = vector.shape_cast %85 : vector<2x1x1x16xf32> to vector<2x1x1x16xf32>
    %87 = vector.broadcast %86 : vector<2x1x1x16xf32> to vector<2x1x8x16xf32>
    %88 = arith.select %84, %87, %82 : vector<2x1x8x16xi1>, vector<2x1x8x16xf32>
    %c7_i32_16 = arith.constant 7 : i32
    %89 = vector.broadcast %c7_i32_16 : i32 to vector<2x1x8x16xi32>
    %90 = arith.cmpi eq, %49, %89 : vector<2x1x8x16xi32>
    %91 = vector.extract_strided_slice %48 {offsets = [0, 0, 0, 0], sizes = [2, 1, 1, 16], strides = [1, 1, 1, 1]} : vector<2x1x8x16xf32> to vector<2x1x1x16xf32>
    %92 = vector.shape_cast %91 : vector<2x1x1x16xf32> to vector<2x1x1x16xf32>
    %93 = vector.broadcast %92 : vector<2x1x1x16xf32> to vector<2x1x8x16xf32>
    %94 = arith.select %90, %93, %88 : vector<2x1x8x16xi1>, vector<2x1x8x16xf32>
    %c0_17 = arith.constant 0 : index
    %c0_18 = arith.constant 0 : index
    %c0_19 = arith.constant 0 : index
    %c0_20 = arith.constant 0 : index
    %95 = vector.load %arg3[%c0_17, %c0_18, %c0_19, %c0_20] : memref<2x1x16x16xf32, #tpu.memory_space<vmem>>, vector<2x1x8x16xf32>
    tpu.vector_store %arg3[%c0_17, %c0_18, %c0_19, %c0_20], %94 {strides = array<i32>} : memref<2x1x16x16xf32, #tpu.memory_space<vmem>>, vector<2x1x8x16xf32>,
    return
  }
  func.func @transform_0(%arg0: i32, %arg1: i32) -> (i32, i32, i32, i32) {
    %c0_i32 = arith.constant 0 : i32
    %0 = arith.subi %c0_i32, %arg1 : i32
    %c0_i32_0 = arith.constant 0 : i32
    %c0_i32_1 = arith.constant 0 : i32
    %c0_i32_2 = arith.constant 0 : i32
    return %arg0, %0, %c0_i32_0, %c0_i32_1 : i32, i32, i32, i32
  }
  func.func @transform_1(%arg0: i32, %arg1: i32) -> (i32, i32, i32, i32) {
    %c0_i32 = arith.constant 0 : i32
    %c0_i32_0 = arith.constant 0 : i32
    %c0_i32_1 = arith.constant 0 : i32
    return %arg0, %arg1, %c0_i32, %c0_i32_0 : i32, i32, i32, i32
  }
}

</mosaic_0001>

<llo_original>
// kernel: branch_1_fun.2
$region0: #{branch_1_fun.2}
  #allocation0 [shape = 'u32[]', space=smem, size = 0x4, offset = 0x4, fixed_abs, tag = 'smem constant byte address 0x4 - core index']
  #allocation1 [shape = 'u32[144,128]{1,0:T(1,128)}', space=vmem, size = 0x12000, scoped, tag = 'internal scratch']
  %s0 = inlined_call_operand.hbm [shape: f32[8,1,16,16], index: 0, kind: input, shape index: {}]
  %s1 = inlined_call_operand.vmem [shape: f32[8,1,16,16], index: 1, kind: output, shape index: {}]
  %s2 = sld [smem:[#allocation0]]
  $region18: #{branch_1_fun.2} parent=0
    _
  %s4 = ssub.s32 1, %s2
  %s5 = scalar_select 0, %s4, %s2
  $region1: #{branch_1_fun.2} parent=0
    #allocation2 [shape = 'u8[65536]{0}', space=vmem, size = 0x10000, scoped, tag = 'input window, operand 0, single buffered']
    #allocation3 [shape = 's32[1]{0}', space=sflag, size = 0x4, scoped, tag = 'scoped memory for branch_1_fun.2']
    %6 = vsyncpa [#allocation3], 0
    // Predicated region
    $region2: #{branch_1_fun.2} parent=1 // pred_check
      _
    $region3: #{branch_1_fun.2} parent=1 // pred_check_branch
      %8 = sbr.rel (0) target = $region5
    $region4: #{branch_1_fun.2} parent=1 // pred_region
      %s9 = ssub.s32 0, 0
      %s11 = ssub.s32 2048, 2048
      %12 = vsyncadd [#allocation3], %s11
      %s13 = smul.addr %s9, 2
      %s14 = smul.addr %s13, 128
      %s15 = scalar_lea.hbm %s0, %s14
      %s16 = sshll.u32 [#allocation2], 4
      %s17 = int_to_ptr.vmem [resolvable:$true] %s16
      %22 = dma.hbm_to_vmem [thread:$0]  %s15, 2048, %s17, [#allocation3], 128, 128, 8
    $region5: #{branch_1_fun.2} parent=1 // pred_fallthru
      _
    // Predicated region
    $region6: #{branch_1_fun.2} parent=1 // pred_check
      _
    $region7: #{branch_1_fun.2} parent=1 // pred_check_branch
      %24 = sbr.rel (0) target = $region9
    $region8: #{branch_1_fun.2} parent=1 // pred_region
      %25 = dma.done [#allocation3], 2048
    $region9: #{branch_1_fun.2} parent=1 // pred_fallthru
      _
    %s26 = ssub.s32 0, 0
    %v27 = vld [vmem:[#allocation2] sm:$0xff]
    %v28 = vld [vmem:[#allocation2 + $0x10] sm:$0xff]
    %v29 = vld [vmem:[#allocation2 + $0x20] sm:$0xff]
    %v30 = vld [vmem:[#allocation2 + $0x30] sm:$0xff]
    %v31 = vld [vmem:[#allocation2 + $0x40] sm:$0xff]
    %v32 = vld [vmem:[#allocation2 + $0x50] sm:$0xff]
    %v33 = vld [vmem:[#allocation2 + $0x60] sm:$0xff]
    %v34 = vld [vmem:[#allocation2 + $0x70] sm:$0xff]
    %v35 = vlaneseq
    %v36 = vshrl.u32 %v35, 7
    %v37 = vlaneseq
    %v38 = vshrl.u32 %v37, 7
    %v39 = vsub.s32 7, %v38
    %v40 = vrot.slane %v27, %v39
    %v41 = vlaneseq
    %v42 = vshrl.u32 %v41, 7
    %v43 = vsub.s32 7, %v42
    %v44 = vrot.slane %v28, %v43
    %v45 = vlaneseq
    %v46 = vshrl.u32 %v45, 7
    %v47 = vsub.s32 7, %v46
    %v48 = vrot.slane %v29, %v47
    %v49 = vlaneseq
    %v50 = vshrl.u32 %v49, 7
    %v51 = vsub.s32 7, %v50
    %v52 = vrot.slane %v30, %v51
    %v53 = vlaneseq
    %v54 = vshrl.u32 %v53, 7
    %v55 = vsub.s32 7, %v54
    %v56 = vrot.slane %v31, %v55
    %v57 = vlaneseq
    %v58 = vshrl.u32 %v57, 7
    %v59 = vsub.s32 7, %v58
    %v60 = vrot.slane %v32, %v59
    %v61 = vlaneseq
    %v62 = vshrl.u32 %v61, 7
    %v63 = vsub.s32 7, %v62
    %v64 = vrot.slane %v33, %v63
    %v65 = vlaneseq
    %v66 = vshrl.u32 %v65, 7
    %v67 = vsub.s32 7, %v66
    %v68 = vrot.slane %v34, %v67
    %vm69 = vcmp.eq.s32.totalorder %v36, 1
    %v70 = vlaneseq
    %v71 = vshrl.u32 %v70, 7
    %v72 = vsub.s32 6, %v71
    %v73 = vrot.slane %v27, %v72
    %v74 = vlaneseq
    %v75 = vshrl.u32 %v74, 7
    %v76 = vsub.s32 6, %v75
    %v77 = vrot.slane %v28, %v76
    %v78 = vlaneseq
    %v79 = vshrl.u32 %v78, 7
    %v80 = vsub.s32 6, %v79
    %v81 = vrot.slane %v29, %v80
    %v82 = vlaneseq
    %v83 = vshrl.u32 %v82, 7
    %v84 = vsub.s32 6, %v83
    %v85 = vrot.slane %v30, %v84
    %v86 = vlaneseq
    %v87 = vshrl.u32 %v86, 7
    %v88 = vsub.s32 6, %v87
    %v89 = vrot.slane %v31, %v88
    %v90 = vlaneseq
    %v91 = vshrl.u32 %v90, 7
    %v92 = vsub.s32 6, %v91
    %v93 = vrot.slane %v32, %v92
    %v94 = vlaneseq
    %v95 = vshrl.u32 %v94, 7
    %v96 = vsub.s32 6, %v95
    %v97 = vrot.slane %v33, %v96
    %v98 = vlaneseq
    %v99 = vshrl.u32 %v98, 7
    %v100 = vsub.s32 6, %v99
    %v101 = vrot.slane %v34, %v100
    %v102 = vsel %vm69, %v73, %v40
    %v103 = vsel %vm69, %v77, %v44
    %v104 = vsel %vm69, %v81, %v48
    %v105 = vsel %vm69, %v85, %v52
    %v106 = vsel %vm69, %v89, %v56
    %v107 = vsel %vm69, %v93, %v60
    %v108 = vsel %vm69, %v97, %v64
    %v109 = vsel %vm69, %v101, %v68
    %vm110 = vcmp.eq.s32.totalorder %v36, 2
    %v111 = vlaneseq
    %v112 = vshrl.u32 %v111, 7
    %v113 = vsub.s32 5, %v112
    %v114 = vrot.slane %v27, %v113
    %v115 = vlaneseq
    %v116 = vshrl.u32 %v115, 7
    %v117 = vsub.s32 5, %v116
    %v118 = vrot.slane %v28, %v117
    %v119 = vlaneseq
    %v120 = vshrl.u32 %v119, 7
    %v121 = vsub.s32 5, %v120
    %v122 = vrot.slane %v29, %v121
    %v123 = vlaneseq
    %v124 = vshrl.u32 %v123, 7
    %v125 = vsub.s32 5, %v124
    %v126 = vrot.slane %v30, %v125
    %v127 = vlaneseq
    %v128 = vshrl.u32 %v127, 7
    %v129 = vsub.s32 5, %v128
    %v130 = vrot.slane %v31, %v129
    %v131 = vlaneseq
    %v132 = vshrl.u32 %v131, 7
    %v133 = vsub.s32 5, %v132
    %v134 = vrot.slane %v32, %v133
    %v135 = vlaneseq
    %v136 = vshrl.u32 %v135, 7
    %v137 = vsub.s32 5, %v136
    %v138 = vrot.slane %v33, %v137
    %v139 = vlaneseq
    %v140 = vshrl.u32 %v139, 7
    %v141 = vsub.s32 5, %v140
    %v142 = vrot.slane %v34, %v141
    %v143 = vsel %vm110, %v114, %v102
    %v144 = vsel %vm110, %v118, %v103
    %v145 = vsel %vm110, %v122, %v104
    %v146 = vsel %vm110, %v126, %v105
    %v147 = vsel %vm110, %v130, %v106
    %v148 = vsel %vm110, %v134, %v107
    %v149 = vsel %vm110, %v138, %v108
    %v150 = vsel %vm110, %v142, %v109
    %vm151 = vcmp.eq.s32.totalorder %v36, 3
    %v152 = vlaneseq
    %v153 = vshrl.u32 %v152, 7
    %v154 = vsub.s32 4, %v153
    %v155 = vrot.slane %v27, %v154
    %v156 = vlaneseq
    %v157 = vshrl.u32 %v156, 7
    %v158 = vsub.s32 4, %v157
    %v159 = vrot.slane %v28, %v158
    %v160 = vlaneseq
    %v161 = vshrl.u32 %v160, 7
    %v162 = vsub.s32 4, %v161
    %v163 = vrot.slane %v29, %v162
    %v164 = vlaneseq
    %v165 = vshrl.u32 %v164, 7
    %v166 = vsub.s32 4, %v165
    %v167 = vrot.slane %v30, %v166
    %v168 = vlaneseq
    %v169 = vshrl.u32 %v168, 7
    %v170 = vsub.s32 4, %v169
    %v171 = vrot.slane %v31, %v170
    %v172 = vlaneseq
    %v173 = vshrl.u32 %v172, 7
    %v174 = vsub.s32 4, %v173
    %v175 = vrot.slane %v32, %v174
    %v176 = vlaneseq
    %v177 = vshrl.u32 %v176, 7
    %v178 = vsub.s32 4, %v177
    %v179 = vrot.slane %v33, %v178
    %v180 = vlaneseq
    %v181 = vshrl.u32 %v180, 7
    %v182 = vsub.s32 4, %v181
    %v183 = vrot.slane %v34, %v182
    %v184 = vsel %vm151, %v155, %v143
    %v185 = vsel %vm151, %v159, %v144
    %v186 = vsel %vm151, %v163, %v145
    %v187 = vsel %vm151, %v167, %v146
    %v188 = vsel %vm151, %v171, %v147
    %v189 = vsel %vm151, %v175, %v148
    %v190 = vsel %vm151, %v179, %v149
    %v191 = vsel %vm151, %v183, %v150
    %vm192 = vcmp.eq.s32.totalorder %v36, 4
    %v193 = vlaneseq
    %v194 = vshrl.u32 %v193, 7
    %v195 = vsub.s32 3, %v194
    %v196 = vrot.slane %v27, %v195
    %v197 = vlaneseq
    %v198 = vshrl.u32 %v197, 7
    %v199 = vsub.s32 3, %v198
    %v200 = vrot.slane %v28, %v199
    %v201 = vlaneseq
    %v202 = vshrl.u32 %v201, 7
    %v203 = vsub.s32 3, %v202
    %v204 = vrot.slane %v29, %v203
    %v205 = vlaneseq
    %v206 = vshrl.u32 %v205, 7
    %v207 = vsub.s32 3, %v206
    %v208 = vrot.slane %v30, %v207
    %v209 = vlaneseq
    %v210 = vshrl.u32 %v209, 7
    %v211 = vsub.s32 3, %v210
    %v212 = vrot.slane %v31, %v211
    %v213 = vlaneseq
    %v214 = vshrl.u32 %v213, 7
    %v215 = vsub.s32 3, %v214
    %v216 = vrot.slane %v32, %v215
    %v217 = vlaneseq
    %v218 = vshrl.u32 %v217, 7
    %v219 = vsub.s32 3, %v218
    %v220 = vrot.slane %v33, %v219
    %v221 = vlaneseq
    %v222 = vshrl.u32 %v221, 7
    %v223 = vsub.s32 3, %v222
    %v224 = vrot.slane %v34, %v223
    %v225 = vsel %vm192, %v196, %v184
    %v226 = vsel %vm192, %v200, %v185
    %v227 = vsel %vm192, %v204, %v186
    %v228 = vsel %vm192, %v208, %v187
    %v229 = vsel %vm192, %v212, %v188
    %v230 = vsel %vm192, %v216, %v189
    %v231 = vsel %vm192, %v220, %v190
    %v232 = vsel %vm192, %v224, %v191
    %vm233 = vcmp.eq.s32.totalorder %v36, 5
    %v234 = vlaneseq
    %v235 = vshrl.u32 %v234, 7
    %v236 = vsub.s32 2, %v235
    %v237 = vrot.slane %v27, %v236
    %v238 = vlaneseq
    %v239 = vshrl.u32 %v238, 7
    %v240 = vsub.s32 2, %v239
    %v241 = vrot.slane %v28, %v240
    %v242 = vlaneseq
    %v243 = vshrl.u32 %v242, 7
    %v244 = vsub.s32 2, %v243
    %v245 = vrot.slane %v29, %v244
    %v246 = vlaneseq
    %v247 = vshrl.u32 %v246, 7
    %v248 = vsub.s32 2, %v247
    %v249 = vrot.slane %v30, %v248
    %v250 = vlaneseq
    %v251 = vshrl.u32 %v250, 7
    %v252 = vsub.s32 2, %v251
    %v253 = vrot.slane %v31, %v252
    %v254 = vlaneseq
    %v255 = vshrl.u32 %v254, 7
    %v256 = vsub.s32 2, %v255
    %v257 = vrot.slane %v32, %v256
    %v258 = vlaneseq
    %v259 = vshrl.u32 %v258, 7
    %v260 = vsub.s32 2, %v259
    %v261 = vrot.slane %v33, %v260
    %v262 = vlaneseq
    %v263 = vshrl.u32 %v262, 7
    %v264 = vsub.s32 2, %v263
    %v265 = vrot.slane %v34, %v264
    %v266 = vsel %vm233, %v237, %v225
    %v267 = vsel %vm233, %v241, %v226
    %v268 = vsel %vm233, %v245, %v227
    %v269 = vsel %vm233, %v249, %v228
    %v270 = vsel %vm233, %v253, %v229
    %v271 = vsel %vm233, %v257, %v230
    %v272 = vsel %vm233, %v261, %v231
    %v273 = vsel %vm233, %v265, %v232
    %vm274 = vcmp.eq.s32.totalorder %v36, 6
    %v275 = vlaneseq
    %v276 = vshrl.u32 %v275, 7
    %v277 = vsub.s32 1, %v276
    %v278 = vrot.slane %v27, %v277
    %v279 = vlaneseq
    %v280 = vshrl.u32 %v279, 7
    %v281 = vsub.s32 1, %v280
    %v282 = vrot.slane %v28, %v281
    %v283 = vlaneseq
    %v284 = vshrl.u32 %v283, 7
    %v285 = vsub.s32 1, %v284
    %v286 = vrot.slane %v29, %v285
    %v287 = vlaneseq
    %v288 = vshrl.u32 %v287, 7
    %v289 = vsub.s32 1, %v288
    %v290 = vrot.slane %v30, %v289
    %v291 = vlaneseq
    %v292 = vshrl.u32 %v291, 7
    %v293 = vsub.s32 1, %v292
    %v294 = vrot.slane %v31, %v293
    %v295 = vlaneseq
    %v296 = vshrl.u32 %v295, 7
    %v297 = vsub.s32 1, %v296
    %v298 = vrot.slane %v32, %v297
    %v299 = vlaneseq
    %v300 = vshrl.u32 %v299, 7
    %v301 = vsub.s32 1, %v300
    %v302 = vrot.slane %v33, %v301
    %v303 = vlaneseq
    %v304 = vshrl.u32 %v303, 7
    %v305 = vsub.s32 1, %v304
    %v306 = vrot.slane %v34, %v305
    %v307 = vsel %vm274, %v278, %v266
    %v308 = vsel %vm274, %v282, %v267
    %v309 = vsel %vm274, %v286, %v268
    %v310 = vsel %vm274, %v290, %v269
    %v311 = vsel %vm274, %v294, %v270
    %v312 = vsel %vm274, %v298, %v271
    %v313 = vsel %vm274, %v302, %v272
    %v314 = vsel %vm274, %v306, %v273
    %vm315 = vcmp.eq.s32.totalorder %v36, 7
    %v316 = vlaneseq
    %v317 = vshrl.u32 %v316, 7
    %v318 = vsub.s32 0, %v317
    %v319 = vrot.slane %v27, %v318
    %v320 = vlaneseq
    %v321 = vshrl.u32 %v320, 7
    %v322 = vsub.s32 0, %v321
    %v323 = vrot.slane %v28, %v322
    %v324 = vlaneseq
    %v325 = vshrl.u32 %v324, 7
    %v326 = vsub.s32 0, %v325
    %v327 = vrot.slane %v29, %v326
    %v328 = vlaneseq
    %v329 = vshrl.u32 %v328, 7
    %v330 = vsub.s32 0, %v329
    %v331 = vrot.slane %v30, %v330
    %v332 = vlaneseq
    %v333 = vshrl.u32 %v332, 7
    %v334 = vsub.s32 0, %v333
    %v335 = vrot.slane %v31, %v334
    %v336 = vlaneseq
    %v337 = vshrl.u32 %v336, 7
    %v338 = vsub.s32 0, %v337
    %v339 = vrot.slane %v32, %v338
    %v340 = vlaneseq
    %v341 = vshrl.u32 %v340, 7
    %v342 = vsub.s32 0, %v341
    %v343 = vrot.slane %v33, %v342
    %v344 = vlaneseq
    %v345 = vshrl.u32 %v344, 7
    %v346 = vsub.s32 0, %v345
    %v347 = vrot.slane %v34, %v346
    %v348 = vsel %vm315, %v319, %v307
    %v349 = vsel %vm315, %v323, %v308
    %v350 = vsel %vm315, %v327, %v309
    %v351 = vsel %vm315, %v331, %v310
    %v352 = vsel %vm315, %v335, %v311
    %v353 = vsel %vm315, %v339, %v312
    %v354 = vsel %vm315, %v343, %v313
    %v355 = vsel %vm315, %v347, %v314
    %vm356 = vcmask 130048
    %357 = vst.msk [vmem:[%s1 + $0x8] sm:$0xff] %vm356, %v348
    %358 = vst.msk [vmem:[%s1 + $0x18] sm:$0xff] %vm356, %v349
    %359 = vst.msk [vmem:[%s1 + $0x28] sm:$0xff] %vm356, %v350
    %360 = vst.msk [vmem:[%s1 + $0x38] sm:$0xff] %vm356, %v351
    %361 = vst.msk [vmem:[%s1 + $0x48] sm:$0xff] %vm356, %v352
    %362 = vst.msk [vmem:[%s1 + $0x58] sm:$0xff] %vm356, %v353
    %363 = vst.msk [vmem:[%s1 + $0x68] sm:$0xff] %vm356, %v354
    %364 = vst.msk [vmem:[%s1 + $0x78] sm:$0xff] %vm356, %v355
    %v365 = vld [vmem:[#allocation2 + $0x8] sm:$0xff]
    %v366 = vld [vmem:[#allocation2 + $0x18] sm:$0xff]
    %v367 = vld [vmem:[#allocation2 + $0x28] sm:$0xff]
    %v368 = vld [vmem:[#allocation2 + $0x38] sm:$0xff]
    %v369 = vld [vmem:[#allocation2 + $0x48] sm:$0xff]
    %v370 = vld [vmem:[#allocation2 + $0x58] sm:$0xff]
    %v371 = vld [vmem:[#allocation2 + $0x68] sm:$0xff]
    %v372 = vld [vmem:[#allocation2 + $0x78] sm:$0xff]
    %v373 = vlaneseq
    %v374 = vshrl.u32 %v373, 7
    %v375 = vsub.s32 7, %v374
    %v376 = vrot.slane %v365, %v375
    %v377 = vlaneseq
    %v378 = vshrl.u32 %v377, 7
    %v379 = vsub.s32 7, %v378
    %v380 = vrot.slane %v366, %v379
    %v381 = vlaneseq
    %v382 = vshrl.u32 %v381, 7
    %v383 = vsub.s32 7, %v382
    %v384 = vrot.slane %v367, %v383
    %v385 = vlaneseq
    %v386 = vshrl.u32 %v385, 7
    %v387 = vsub.s32 7, %v386
    %v388 = vrot.slane %v368, %v387
    %v389 = vlaneseq
    %v390 = vshrl.u32 %v389, 7
    %v391 = vsub.s32 7, %v390
    %v392 = vrot.slane %v369, %v391
    %v393 = vlaneseq
    %v394 = vshrl.u32 %v393, 7
    %v395 = vsub.s32 7, %v394
    %v396 = vrot.slane %v370, %v395
    %v397 = vlaneseq
    %v398 = vshrl.u32 %v397, 7
    %v399 = vsub.s32 7, %v398
    %v400 = vrot.slane %v371, %v399
    %v401 = vlaneseq
    %v402 = vshrl.u32 %v401, 7
    %v403 = vsub.s32 7, %v402
    %v404 = vrot.slane %v372, %v403
    %v405 = vlaneseq
    %v406 = vshrl.u32 %v405, 7
    %v407 = vsub.s32 6, %v406
    %v408 = vrot.slane %v365, %v407
    %v409 = vlaneseq
    %v410 = vshrl.u32 %v409, 7
    %v411 = vsub.s32 6, %v410
    %v412 = vrot.slane %v366, %v411
    %v413 = vlaneseq
    %v414 = vshrl.u32 %v413, 7
    %v415 = vsub.s32 6, %v414
    %v416 = vrot.slane %v367, %v415
    %v417 = vlaneseq
    %v418 = vshrl.u32 %v417, 7
    %v419 = vsub.s32 6, %v418
    %v420 = vrot.slane %v368, %v419
    %v421 = vlaneseq
    %v422 = vshrl.u32 %v421, 7
    %v423 = vsub.s32 6, %v422
    %v424 = vrot.slane %v369, %v423
    %v425 = vlaneseq
    %v426 = vshrl.u32 %v425, 7
    %v427 = vsub.s32 6, %v426
    %v428 = vrot.slane %v370, %v427
    %v429 = vlaneseq
    %v430 = vshrl.u32 %v429, 7
    %v431 = vsub.s32 6, %v430
    %v432 = vrot.slane %v371, %v431
    %v433 = vlaneseq
    %v434 = vshrl.u32 %v433, 7
    %v435 = vsub.s32 6, %v434
    %v436 = vrot.slane %v372, %v435
    %v437 = vsel %vm69, %v408, %v376
    %v438 = vsel %vm69, %v412, %v380
    %v439 = vsel %vm69, %v416, %v384
    %v440 = vsel %vm69, %v420, %v388
    %v441 = vsel %vm69, %v424, %v392
    %v442 = vsel %vm69, %v428, %v396
    %v443 = vsel %vm69, %v432, %v400
    %v444 = vsel %vm69, %v436, %v404
    %v445 = vlaneseq
    %v446 = vshrl.u32 %v445, 7
    %v447 = vsub.s32 5, %v446
    %v448 = vrot.slane %v365, %v447
    %v449 = vlaneseq
    %v450 = vshrl.u32 %v449, 7
    %v451 = vsub.s32 5, %v450
    %v452 = vrot.slane %v366, %v451
    %v453 = vlaneseq
    %v454 = vshrl.u32 %v453, 7
    %v455 = vsub.s32 5, %v454
    %v456 = vrot.slane %v367, %v455
    %v457 = vlaneseq
    %v458 = vshrl.u32 %v457, 7
    %v459 = vsub.s32 5, %v458
    %v460 = vrot.slane %v368, %v459
    %v461 = vlaneseq
    %v462 = vshrl.u32 %v461, 7
    %v463 = vsub.s32 5, %v462
    %v464 = vrot.slane %v369, %v463
    %v465 = vlaneseq
    %v466 = vshrl.u32 %v465, 7
    %v467 = vsub.s32 5, %v466
    %v468 = vrot.slane %v370, %v467
    %v469 = vlaneseq
    %v470 = vshrl.u32 %v469, 7
    %v471 = vsub.s32 5, %v470
    %v472 = vrot.slane %v371, %v471
    %v473 = vlaneseq
    %v474 = vshrl.u32 %v473, 7
    %v475 = vsub.s32 5, %v474
    %v476 = vrot.slane %v372, %v475
    %v477 = vsel %vm110, %v448, %v437
    %v478 = vsel %vm110, %v452, %v438
    %v479 = vsel %vm110, %v456, %v439
    %v480 = vsel %vm110, %v460, %v440
    %v481 = vsel %vm110, %v464, %v441
    %v482 = vsel %vm110, %v468, %v442
    %v483 = vsel %vm110, %v472, %v443
    %v484 = vsel %vm110, %v476, %v444
    %v485 = vlaneseq
    %v486 = vshrl.u32 %v485, 7
    %v487 = vsub.s32 4, %v486
    %v488 = vrot.slane %v365, %v487
    %v489 = vlaneseq
    %v490 = vshrl.u32 %v489, 7
    %v491 = vsub.s32 4, %v490
    %v492 = vrot.slane %v366, %v491
    %v493 = vlaneseq
    %v494 = vshrl.u32 %v493, 7
    %v495 = vsub.s32 4, %v494
    %v496 = vrot.slane %v367, %v495
    %v497 = vlaneseq
    %v498 = vshrl.u32 %v497, 7
    %v499 = vsub.s32 4, %v498
    %v500 = vrot.slane %v368, %v499
    %v501 = vlaneseq
    %v502 = vshrl.u32 %v501, 7
    %v503 = vsub.s32 4, %v502
    %v504 = vrot.slane %v369, %v503
    %v505 = vlaneseq
    %v506 = vshrl.u32 %v505, 7
    %v507 = vsub.s32 4, %v506
    %v508 = vrot.slane %v370, %v507
    %v509 = vlaneseq
    %v510 = vshrl.u32 %v509, 7
    %v511 = vsub.s32 4, %v510
    %v512 = vrot.slane %v371, %v511
    %v513 = vlaneseq
    %v514 = vshrl.u32 %v513, 7
    %v515 = vsub.s32 4, %v514
    %v516 = vrot.slane %v372, %v515
    %v517 = vsel %vm151, %v488, %v477
    %v518 = vsel %vm151, %v492, %v478
    %v519 = vsel %vm151, %v496, %v479
    %v520 = vsel %vm151, %v500, %v480
    %v521 = vsel %vm151, %v504, %v481
    %v522 = vsel %vm151, %v508, %v482
    %v523 = vsel %vm151, %v512, %v483
    %v524 = vsel %vm151, %v516, %v484
    %v525 = vlaneseq
    %v526 = vshrl.u32 %v525, 7
    %v527 = vsub.s32 3, %v526
    %v528 = vrot.slane %v365, %v527
    %v529 = vlaneseq
    %v530 = vshrl.u32 %v529, 7
    %v531 = vsub.s32 3, %v530
    %v532 = vrot.slane %v366, %v531
    %v533 = vlaneseq
    %v534 = vshrl.u32 %v533, 7
    %v535 = vsub.s32 3, %v534
    %v536 = vrot.slane %v367, %v535
    %v537 = vlaneseq
    %v538 = vshrl.u32 %v537, 7
    %v539 = vsub.s32 3, %v538
    %v540 = vrot.slane %v368, %v539
    %v541 = vlaneseq
    %v542 = vshrl.u32 %v541, 7
    %v543 = vsub.s32 3, %v542
    %v544 = vrot.slane %v369, %v543
    %v545 = vlaneseq
    %v546 = vshrl.u32 %v545, 7
    %v547 = vsub.s32 3, %v546
    %v548 = vrot.slane %v370, %v547
    %v549 = vlaneseq
    %v550 = vshrl.u32 %v549, 7
    %v551 = vsub.s32 3, %v550
    %v552 = vrot.slane %v371, %v551
    %v553 = vlaneseq
    %v554 = vshrl.u32 %v553, 7
    %v555 = vsub.s32 3, %v554
    %v556 = vrot.slane %v372, %v555
    %v557 = vsel %vm192, %v528, %v517
    %v558 = vsel %vm192, %v532, %v518
    %v559 = vsel %vm192, %v536, %v519
    %v560 = vsel %vm192, %v540, %v520
    %v561 = vsel %vm192, %v544, %v521
    %v562 = vsel %vm192, %v548, %v522
    %v563 = vsel %vm192, %v552, %v523
    %v564 = vsel %vm192, %v556, %v524
    %v565 = vlaneseq
    %v566 = vshrl.u32 %v565, 7
    %v567 = vsub.s32 2, %v566
    %v568 = vrot.slane %v365, %v567
    %v569 = vlaneseq
    %v570 = vshrl.u32 %v569, 7
    %v571 = vsub.s32 2, %v570
    %v572 = vrot.slane %v366, %v571
    %v573 = vlaneseq
    %v574 = vshrl.u32 %v573, 7
    %v575 = vsub.s32 2, %v574
    %v576 = vrot.slane %v367, %v575
    %v577 = vlaneseq
    %v578 = vshrl.u32 %v577, 7
    %v579 = vsub.s32 2, %v578
    %v580 = vrot.slane %v368, %v579
    %v581 = vlaneseq
    %v582 = vshrl.u32 %v581, 7
    %v583 = vsub.s32 2, %v582
    %v584 = vrot.slane %v369, %v583
    %v585 = vlaneseq
    %v586 = vshrl.u32 %v585, 7
    %v587 = vsub.s32 2, %v586
    %v588 = vrot.slane %v370, %v587
    %v589 = vlaneseq
    %v590 = vshrl.u32 %v589, 7
    %v591 = vsub.s32 2, %v590
    %v592 = vrot.slane %v371, %v591
    %v593 = vlaneseq
    %v594 = vshrl.u32 %v593, 7
    %v595 = vsub.s32 2, %v594
    %v596 = vrot.slane %v372, %v595
    %v597 = vsel %vm233, %v568, %v557
    %v598 = vsel %vm233, %v572, %v558
    %v599 = vsel %vm233, %v576, %v559
    %v600 = vsel %vm233, %v580, %v560
    %v601 = vsel %vm233, %v584, %v561
    %v602 = vsel %vm233, %v588, %v562
    %v603 = vsel %vm233, %v592, %v563
    %v604 = vsel %vm233, %v596, %v564
    %v605 = vlaneseq
    %v606 = vshrl.u32 %v605, 7
    %v607 = vsub.s32 1, %v606
    %v608 = vrot.slane %v365, %v607
    %v609 = vlaneseq
    %v610 = vshrl.u32 %v609, 7
    %v611 = vsub.s32 1, %v610
    %v612 = vrot.slane %v366, %v611
    %v613 = vlaneseq
    %v614 = vshrl.u32 %v613, 7
    %v615 = vsub.s32 1, %v614
    %v616 = vrot.slane %v367, %v615
    %v617 = vlaneseq
    %v618 = vshrl.u32 %v617, 7
    %v619 = vsub.s32 1, %v618
    %v620 = vrot.slane %v368, %v619
    %v621 = vlaneseq
    %v622 = vshrl.u32 %v621, 7
    %v623 = vsub.s32 1, %v622
    %v624 = vrot.slane %v369, %v623
    %v625 = vlaneseq
    %v626 = vshrl.u32 %v625, 7
    %v627 = vsub.s32 1, %v626
    %v628 = vrot.slane %v370, %v627
    %v629 = vlaneseq
    %v630 = vshrl.u32 %v629, 7
    %v631 = vsub.s32 1, %v630
    %v632 = vrot.slane %v371, %v631
    %v633 = vlaneseq
    %v634 = vshrl.u32 %v633, 7
    %v635 = vsub.s32 1, %v634
    %v636 = vrot.slane %v372, %v635
    %v637 = vsel %vm274, %v608, %v597
    %v638 = vsel %vm274, %v612, %v598
    %v639 = vsel %vm274, %v616, %v599
    %v640 = vsel %vm274, %v620, %v600
    %v641 = vsel %vm274, %v624, %v601
    %v642 = vsel %vm274, %v628, %v602
    %v643 = vsel %vm274, %v632, %v603
    %v644 = vsel %vm274, %v636, %v604
    %v645 = vlaneseq
    %v646 = vshrl.u32 %v645, 7
    %v647 = vsub.s32 0, %v646
    %v648 = vrot.slane %v365, %v647
    %v649 = vlaneseq
    %v650 = vshrl.u32 %v649, 7
    %v651 = vsub.s32 0, %v650
    %v652 = vrot.slane %v366, %v651
    %v653 = vlaneseq
    %v654 = vshrl.u32 %v653, 7
    %v655 = vsub.s32 0, %v654
    %v656 = vrot.slane %v367, %v655
    %v657 = vlaneseq
    %v658 = vshrl.u32 %v657, 7
    %v659 = vsub.s32 0, %v658
    %v660 = vrot.slane %v368, %v659
    %v661 = vlaneseq
    %v662 = vshrl.u32 %v661, 7
    %v663 = vsub.s32 0, %v662
    %v664 = vrot.slane %v369, %v663
    %v665 = vlaneseq
    %v666 = vshrl.u32 %v665, 7
    %v667 = vsub.s32 0, %v666
    %v668 = vrot.slane %v370, %v667
    %v669 = vlaneseq
    %v670 = vshrl.u32 %v669, 7
    %v671 = vsub.s32 0, %v670
    %v672 = vrot.slane %v371, %v671
    %v673 = vlaneseq
    %v674 = vshrl.u32 %v673, 7
    %v675 = vsub.s32 0, %v674
    %v676 = vrot.slane %v372, %v675
    %v677 = vsel %vm315, %v648, %v637
    %v678 = vsel %vm315, %v652, %v638
    %v679 = vsel %vm315, %v656, %v639
    %v680 = vsel %vm315, %v660, %v640
    %v681 = vsel %vm315, %v664, %v641
    %v682 = vsel %vm315, %v668, %v642
    %v683 = vsel %vm315, %v672, %v643
    %v684 = vsel %vm315, %v676, %v644
    %685 = vst.msk [vmem:[%s1] sm:$0xff] %vm356, %v677
    %686 = vst.msk [vmem:[%s1 + $0x10] sm:$0xff] %vm356, %v678
    %687 = vst.msk [vmem:[%s1 + $0x20] sm:$0xff] %vm356, %v679
    %688 = vst.msk [vmem:[%s1 + $0x30] sm:$0xff] %vm356, %v680
    %689 = vst.msk [vmem:[%s1 + $0x40] sm:$0xff] %vm356, %v681
    %690 = vst.msk [vmem:[%s1 + $0x50] sm:$0xff] %vm356, %v682
    %691 = vst.msk [vmem:[%s1 + $0x60] sm:$0xff] %vm356, %v683
    %692 = vst.msk [vmem:[%s1 + $0x70] sm:$0xff] %vm356, %v684
    // Predicated region
    $region10: #{branch_1_fun.2} parent=1 // pred_check
      _
    $region11: #{branch_1_fun.2} parent=1 // pred_check_branch
      %694 = sbr.rel (0) target = $region13
    $region12: #{branch_1_fun.2} parent=1 // pred_region
      _
    $region13: #{branch_1_fun.2} parent=1 // pred_fallthru
      _
    // Predicated region
    $region14: #{branch_1_fun.2} parent=1 // pred_check
      _
    $region15: #{branch_1_fun.2} parent=1 // pred_check_branch
      %696 = sbr.rel (0) target = $region17
    $region16: #{branch_1_fun.2} parent=1 // pred_region
      _
    $region17: #{branch_1_fun.2} parent=1 // pred_fallthru
      _
    %697 = vsyncpa [#allocation3], 1

// kernel: branch_1_fun.3
$region0: #{branch_1_fun.3}
  #allocation0 [shape = 'u32[]', space=smem, size = 0x4, offset = 0x4, fixed_abs, tag = 'smem constant byte address 0x4 - core index']
  #allocation1 [shape = 'u32[144,128]{1,0:T(1,128)}', space=vmem, size = 0x12000, scoped, tag = 'internal scratch']
  %s0 = inlined_call_operand.hbm [shape: f32[2,1,16,16], index: 0, kind: input, shape index: {}]
  %s1 = inlined_call_operand.vmem [shape: f32[2,1,16,16], index: 1, kind: output, shape index: {}]
  %s2 = sld [smem:[#allocation0]]
  $region18: #{branch_1_fun.3} parent=0
    _
  %s4 = ssub.s32 1, %s2
  %s5 = scalar_select 0, %s4, %s2
  $region1: #{branch_1_fun.3} parent=0
    #allocation2 [shape = 'u8[16384]{0}', space=vmem, size = 0x4000, scoped, tag = 'input window, operand 0, single buffered']
    #allocation3 [shape = 's32[1]{0}', space=sflag, size = 0x4, scoped, tag = 'scoped memory for branch_1_fun.3']
    %6 = vsyncpa [#allocation3], 0
    // Predicated region
    $region2: #{branch_1_fun.3} parent=1 // pred_check
      _
    $region3: #{branch_1_fun.3} parent=1 // pred_check_branch
      %8 = sbr.rel (0) target = $region5
    $region4: #{branch_1_fun.3} parent=1 // pred_region
      %s9 = ssub.s32 0, 0
      %s11 = ssub.s32 512, 512
      %12 = vsyncadd [#allocation3], %s11
      %s13 = smul.addr %s9, 2
      %s14 = smul.addr %s13, 128
      %s15 = scalar_lea.hbm %s0, %s14
      %s16 = sshll.u32 [#allocation2], 4
      %s17 = int_to_ptr.vmem [resolvable:$true] %s16
      %22 = dma.hbm_to_vmem [thread:$0]  %s15, 512, %s17, [#allocation3], 128, 128, 8
    $region5: #{branch_1_fun.3} parent=1 // pred_fallthru
      _
    // Predicated region
    $region6: #{branch_1_fun.3} parent=1 // pred_check
      _
    $region7: #{branch_1_fun.3} parent=1 // pred_check_branch
      %24 = sbr.rel (0) target = $region9
    $region8: #{branch_1_fun.3} parent=1 // pred_region
      %25 = dma.done [#allocation3], 512
    $region9: #{branch_1_fun.3} parent=1 // pred_fallthru
      _
    %s26 = ssub.s32 0, 0
    %v27 = vld [vmem:[#allocation2] sm:$0xff]
    %v28 = vld [vmem:[#allocation2 + $0x10] sm:$0xff]
    %v29 = vlaneseq
    %v30 = vshrl.u32 %v29, 7
    %v31 = vlaneseq
    %v32 = vshrl.u32 %v31, 7
    %v33 = vsub.s32 7, %v32
    %v34 = vrot.slane %v27, %v33
    %v35 = vlaneseq
    %v36 = vshrl.u32 %v35, 7
    %v37 = vsub.s32 7, %v36
    %v38 = vrot.slane %v28, %v37
    %vm39 = vcmp.eq.s32.totalorder %v30, 1
    %v40 = vlaneseq
    %v41 = vshrl.u32 %v40, 7
    %v42 = vsub.s32 6, %v41
    %v43 = vrot.slane %v27, %v42
    %v44 = vlaneseq
    %v45 = vshrl.u32 %v44, 7
    %v46 = vsub.s32 6, %v45
    %v47 = vrot.slane %v28, %v46
    %v48 = vsel %vm39, %v43, %v34
    %v49 = vsel %vm39, %v47, %v38
    %vm50 = vcmp.eq.s32.totalorder %v30, 2
    %v51 = vlaneseq
    %v52 = vshrl.u32 %v51, 7
    %v53 = vsub.s32 5, %v52
    %v54 = vrot.slane %v27, %v53
    %v55 = vlaneseq
    %v56 = vshrl.u32 %v55, 7
    %v57 = vsub.s32 5, %v56
    %v58 = vrot.slane %v28, %v57
    %v59 = vsel %vm50, %v54, %v48
    %v60 = vsel %vm50, %v58, %v49
    %vm61 = vcmp.eq.s32.totalorder %v30, 3
    %v62 = vlaneseq
    %v63 = vshrl.u32 %v62, 7
    %v64 = vsub.s32 4, %v63
    %v65 = vrot.slane %v27, %v64
    %v66 = vlaneseq
    %v67 = vshrl.u32 %v66, 7
    %v68 = vsub.s32 4, %v67
    %v69 = vrot.slane %v28, %v68
    %v70 = vsel %vm61, %v65, %v59
    %v71 = vsel %vm61, %v69, %v60
    %vm72 = vcmp.eq.s32.totalorder %v30, 4
    %v73 = vlaneseq
    %v74 = vshrl.u32 %v73, 7
    %v75 = vsub.s32 3, %v74
    %v76 = vrot.slane %v27, %v75
    %v77 = vlaneseq
    %v78 = vshrl.u32 %v77, 7
    %v79 = vsub.s32 3, %v78
    %v80 = vrot.slane %v28, %v79
    %v81 = vsel %vm72, %v76, %v70
    %v82 = vsel %vm72, %v80, %v71
    %vm83 = vcmp.eq.s32.totalorder %v30, 5
    %v84 = vlaneseq
    %v85 = vshrl.u32 %v84, 7
    %v86 = vsub.s32 2, %v85
    %v87 = vrot.slane %v27, %v86
    %v88 = vlaneseq
    %v89 = vshrl.u32 %v88, 7
    %v90 = vsub.s32 2, %v89
    %v91 = vrot.slane %v28, %v90
    %v92 = vsel %vm83, %v87, %v81
    %v93 = vsel %vm83, %v91, %v82
    %vm94 = vcmp.eq.s32.totalorder %v30, 6
    %v95 = vlaneseq
    %v96 = vshrl.u32 %v95, 7
    %v97 = vsub.s32 1, %v96
    %v98 = vrot.slane %v27, %v97
    %v99 = vlaneseq
    %v100 = vshrl.u32 %v99, 7
    %v101 = vsub.s32 1, %v100
    %v102 = vrot.slane %v28, %v101
    %v103 = vsel %vm94, %v98, %v92
    %v104 = vsel %vm94, %v102, %v93
    %vm105 = vcmp.eq.s32.totalorder %v30, 7
    %v106 = vlaneseq
    %v107 = vshrl.u32 %v106, 7
    %v108 = vsub.s32 0, %v107
    %v109 = vrot.slane %v27, %v108
    %v110 = vlaneseq
    %v111 = vshrl.u32 %v110, 7
    %v112 = vsub.s32 0, %v111
    %v113 = vrot.slane %v28, %v112
    %v114 = vsel %vm105, %v109, %v103
    %v115 = vsel %vm105, %v113, %v104
    %vm116 = vcmask 130048
    %117 = vst.msk [vmem:[%s1 + $0x8] sm:$0xff] %vm116, %v114
    %118 = vst.msk [vmem:[%s1 + $0x18] sm:$0xff] %vm116, %v115
    %v119 = vld [vmem:[#allocation2 + $0x8] sm:$0xff]
    %v120 = vld [vmem:[#allocation2 + $0x18] sm:$0xff]
    %v121 = vlaneseq
    %v122 = vshrl.u32 %v121, 7
    %v123 = vsub.s32 7, %v122
    %v124 = vrot.slane %v119, %v123
    %v125 = vlaneseq
    %v126 = vshrl.u32 %v125, 7
    %v127 = vsub.s32 7, %v126
    %v128 = vrot.slane %v120, %v127
    %v129 = vlaneseq
    %v130 = vshrl.u32 %v129, 7
    %v131 = vsub.s32 6, %v130
    %v132 = vrot.slane %v119, %v131
    %v133 = vlaneseq
    %v134 = vshrl.u32 %v133, 7
    %v135 = vsub.s32 6, %v134
    %v136 = vrot.slane %v120, %v135
    %v137 = vsel %vm39, %v132, %v124
    %v138 = vsel %vm39, %v136, %v128
    %v139 = vlaneseq
    %v140 = vshrl.u32 %v139, 7
    %v141 = vsub.s32 5, %v140
    %v142 = vrot.slane %v119, %v141
    %v143 = vlaneseq
    %v144 = vshrl.u32 %v143, 7
    %v145 = vsub.s32 5, %v144
    %v146 = vrot.slane %v120, %v145
    %v147 = vsel %vm50, %v142, %v137
    %v148 = vsel %vm50, %v146, %v138
    %v149 = vlaneseq
    %v150 = vshrl.u32 %v149, 7
    %v151 = vsub.s32 4, %v150
    %v152 = vrot.slane %v119, %v151
    %v153 = vlaneseq
    %v154 = vshrl.u32 %v153, 7
    %v155 = vsub.s32 4, %v154
    %v156 = vrot.slane %v120, %v155
    %v157 = vsel %vm61, %v152, %v147
    %v158 = vsel %vm61, %v156, %v148
    %v159 = vlaneseq
    %v160 = vshrl.u32 %v159, 7
    %v161 = vsub.s32 3, %v160
    %v162 = vrot.slane %v119, %v161
    %v163 = vlaneseq
    %v164 = vshrl.u32 %v163, 7
    %v165 = vsub.s32 3, %v164
    %v166 = vrot.slane %v120, %v165
    %v167 = vsel %vm72, %v162, %v157
    %v168 = vsel %vm72, %v166, %v158
    %v169 = vlaneseq
    %v170 = vshrl.u32 %v169, 7
    %v171 = vsub.s32 2, %v170
    %v172 = vrot.slane %v119, %v171
    %v173 = vlaneseq
    %v174 = vshrl.u32 %v173, 7
    %v175 = vsub.s32 2, %v174
    %v176 = vrot.slane %v120, %v175
    %v177 = vsel %vm83, %v172, %v167
    %v178 = vsel %vm83, %v176, %v168
    %v179 = vlaneseq
    %v180 = vshrl.u32 %v179, 7
    %v181 = vsub.s32 1, %v180
    %v182 = vrot.slane %v119, %v181
    %v183 = vlaneseq
    %v184 = vshrl.u32 %v183, 7
    %v185 = vsub.s32 1, %v184
    %v186 = vrot.slane %v120, %v185
    %v187 = vsel %vm94, %v182, %v177
    %v188 = vsel %vm94, %v186, %v178
    %v189 = vlaneseq
    %v190 = vshrl.u32 %v189, 7
    %v191 = vsub.s32 0, %v190
    %v192 = vrot.slane %v119, %v191
    %v193 = vlaneseq
    %v194 = vshrl.u32 %v193, 7
    %v195 = vsub.s32 0, %v194
    %v196 = vrot.slane %v120, %v195
    %v197 = vsel %vm105, %v192, %v187
    %v198 = vsel %vm105, %v196, %v188
    %199 = vst.msk [vmem:[%s1] sm:$0xff] %vm116, %v197
    %200 = vst.msk [vmem:[%s1 + $0x10] sm:$0xff] %vm116, %v198
    // Predicated region
    $region10: #{branch_1_fun.3} parent=1 // pred_check
      _
    $region11: #{branch_1_fun.3} parent=1 // pred_check_branch
      %202 = sbr.rel (0) target = $region13
    $region12: #{branch_1_fun.3} parent=1 // pred_region
      _
    $region13: #{branch_1_fun.3} parent=1 // pred_fallthru
      _
    // Predicated region
    $region14: #{branch_1_fun.3} parent=1 // pred_check
      _
    $region15: #{branch_1_fun.3} parent=1 // pred_check_branch
      %204 = sbr.rel (0) target = $region17
    $region16: #{branch_1_fun.3} parent=1 // pred_region
      _
    $region17: #{branch_1_fun.3} parent=1 // pred_fallthru
      _
    %205 = vsyncpa [#allocation3], 1

</llo_original>
